<compile_context>
chip_gen: v7x
topology: tpu7x:2x2x1
jax: 0.10.0
libtpu: 0.0.40
codegen_flags: <defaults>
</compile_context>

<pallas_src>
import jax
import jax.numpy as jnp
from jax.experimental import pallas as pl
from jax.experimental.pallas import tpu as pltpu


def _cdiv(a, b):
    return -(-a // b)


def _conv1x1_channel_major_kernel(x_ref, w_ref, b_ref, o_ref):
    # x_ref: (Nb, Cin, TS)   w_ref: (Cout, Cin)   b_ref: (Cout, 1)
    # o_ref: (Nb, Cout, TS)  -- TS is lane-dense (last axis)
    x = x_ref[...]                       # (Nb, Cin, TS)
    w = w_ref[...]                       # (Cout, Cin)
    nb, cin, ts = x.shape
    cout = w.shape[0]
    # bias + other already folded; broadcast hoisted once (not per channel).
    acc = jnp.broadcast_to(b_ref[...].reshape(1, cout, 1), (nb, cout, ts))
    for c in range(cin):                 # Cin == 3: static unroll, pure VPU FMAs
        acc = acc + w[:, c].reshape(1, cout, 1) * x[:, c:c + 1, :]
    o_ref[...] = acc


def _select_tiling(N, S, target_lanes=131072, lane=128):
    """Pick (Nb, TS) so each grid step moves O(MiB) and grid has >=2 blocks."""
    if S >= target_lanes:
        TS = target_lanes                        # multiple of 128
        Nb = 1
    else:
        TS = S                                   # full spatial axis in one block
        Nb = max(1, min(N, target_lanes // max(S, 1)))
    n_blocks = _cdiv(N, Nb) * _cdiv(S, TS)
    if n_blocks < 2:
        # Keep both v7x TensorCores busy when the input is big enough to split.
        if S > lane:
            TS = _cdiv(_cdiv(S, 2), lane) * lane  # ~half of S, lane-aligned
        elif N >= 2:
            Nb = _cdiv(N, 2)
    return Nb, TS


def model_forward(x, weight, bias, other=1.0):
    """Model.forward: Conv2d(3, 8, 1, stride=1, padding=1)(x) + other.

    x      : (N, Cin, H, W)   float32 (NCHW, like PyTorch)
    weight : (Cout, Cin, 1, 1)
    bias   : (Cout,)
    returns: (N, Cout, H+2, W+2)   (1x1 conv with padding=1 grows spatial dims)
    """
    N, Cin, H, W = x.shape
    Cout = weight.shape[0]
    Hp, Wp = H + 2, W + 2
    S = Hp * Wp

    # Spatial zero-pad (padding=1); conv of zero pixels == bias (+ other).
    # TODO(synk): fuse this pad into the kernel to drop one HBM pass on x.
    xp = jnp.pad(x.astype(jnp.float32), ((0, 0), (0, 0), (1, 1), (1, 1)))
    # Free reshape: keep channel-major, flatten spatial to the last (lane) axis.
    xs = xp.reshape(N, Cin, S)

    w = weight.reshape(Cout, Cin).astype(jnp.float32)
    # Fold bias and "+ other" into one per-channel constant.
    bfold = (bias.astype(jnp.float32) + jnp.float32(other)).reshape(Cout, 1)

    Nb, TS = _select_tiling(N, S)
    grid = (_cdiv(N, Nb), _cdiv(S, TS))

    out = pl.pallas_call(
        _conv1x1_channel_major_kernel,
        out_shape=jax.ShapeDtypeStruct((N, Cout, S), jnp.float32),
        grid=grid,
        in_specs=[
            pl.BlockSpec((Nb, Cin, TS), lambda n, s: (n, 0, s)),
            pl.BlockSpec((Cout, Cin), lambda n, s: (0, 0)),
            pl.BlockSpec((Cout, 1), lambda n, s: (0, 0)),
        ],
        out_specs=pl.BlockSpec((Nb, Cout, TS), lambda n, s: (n, 0, s)),
        compiler_params=pltpu.CompilerParams(
            dimension_semantics=("parallel", "parallel"),
            vmem_limit_bytes=32 * 1024 * 1024),
    )(xs, w, bfold)

    # Exact-size output: no slice, just a free NCHW reshape (S == Hp*Wp).
    return out.reshape(N, Cout, Hp, Wp)


if __name__ == "__main__":
    key = jax.random.PRNGKey(0)
    kx, kw, kb, kx2 = jax.random.split(key, 4)

    Cin, Cout = 3, 8
    weight = jax.random.normal(kw, (Cout, Cin, 1, 1), dtype=jnp.float32) * 0.1
    bias = jax.random.normal(kb, (Cout,), dtype=jnp.float32) * 0.1
    other = 1.0  # module default

    def ref_fn(xin):
        xpad = jnp.pad(xin, ((0, 0), (0, 0), (1, 1), (1, 1)))
        return (jnp.einsum("nchw,oc->nohw", xpad, weight.reshape(Cout, Cin))
                + bias.reshape(1, Cout, 1, 1) + other)

    # Case 1: module's own shape (1, 3, 64, 64) -> ragged S (4356), spatial
    # axis split into 2 lane-aligned tiles with a masked partial last block.
    x = jax.random.normal(kx, (1, Cin, 64, 64), dtype=jnp.float32)
    y = jax.block_until_ready(model_forward(x, weight, bias, other=other))
    assert y.shape == (1, Cout, 66, 66)
    assert jnp.allclose(y, ref_fn(x), atol=1e-4, rtol=1e-4)

    # Case 2: batch-heavy, spatially small -> batch-blocked grid with a masked
    # partial batch block.
    x2 = jax.random.normal(kx2, (5, Cin, 6, 6), dtype=jnp.float32)
    y2 = jax.block_until_ready(model_forward(x2, weight, bias, other=other))
    assert y2.shape == (5, Cout, 8, 8)
    assert jnp.allclose(y2, ref_fn(x2), atol=1e-4, rtol=1e-4)

    print("KERNEL_OK")
</pallas_src>

<mosaic_0001>
module attributes {stable_mosaic.version = 11 : i64} {
  func.func @_conv1x1_channel_major_kernel(%arg0: i32, %arg1: i32, %arg2: memref<1x3x2304xf32, #tpu.memory_space<vmem>>, %arg3: memref<8x3xf32, #tpu.memory_space<vmem>>, %arg4: memref<8x1xf32, #tpu.memory_space<vmem>>, %arg5: memref<1x8x2304xf32, #tpu.memory_space<vmem>>) attributes {dimension_semantics = [#tpu.dimension_semantics<parallel>, #tpu.dimension_semantics<parallel>], iteration_bounds = array<i64: 1, 2>, scalar_prefetch = 0 : i64, scratch_operands = 0 : i64, tpu.core_type = #tpu.core_type<tc>, window_params = [{transform_indices = @transform_0, window_bounds = array<i64: 1, 3, 2304>}, {pipeline_mode = #tpu.pipeline_mode<synchronous>, transform_indices = @transform_1, window_bounds = array<i64: 8, 3>}, {pipeline_mode = #tpu.pipeline_mode<synchronous>, transform_indices = @transform_2, window_bounds = array<i64: 8, 1>}, {transform_indices = @transform_3, window_bounds = array<i64: 1, 8, 2304>}]} {
    %c0 = arith.constant 0 : index
    %c0_0 = arith.constant 0 : index
    %c0_1 = arith.constant 0 : index
    %0 = vector.load %arg2[%c0, %c0_0, %c0_1] : memref<1x3x2304xf32, #tpu.memory_space<vmem>>, vector<1x3x2304xf32>
    %c0_2 = arith.constant 0 : index
    %c0_3 = arith.constant 0 : index
    %1 = vector.load %arg3[%c0_2, %c0_3] : memref<8x3xf32, #tpu.memory_space<vmem>>, vector<8x3xf32>
    %c0_4 = arith.constant 0 : index
    %c0_5 = arith.constant 0 : index
    %2 = vector.load %arg4[%c0_4, %c0_5] : memref<8x1xf32, #tpu.memory_space<vmem>>, vector<8x1xf32>
    %3 = vector.shape_cast %2 : vector<8x1xf32> to vector<1x8x1xf32>
    %4 = vector.shape_cast %3 : vector<1x8x1xf32> to vector<1x8x1xf32>
    %5 = vector.broadcast %4 : vector<1x8x1xf32> to vector<1x8x2304xf32>
    %6 = vector.extract_strided_slice %1 {offsets = [0, 0], sizes = [8, 1], strides = [1, 1]} : vector<8x3xf32> to vector<8x1xf32>
    %7 = vector.shape_cast %6 : vector<8x1xf32> to vector<8xf32>
    %8 = vector.shape_cast %7 : vector<8xf32> to vector<1x8x1xf32>
    %9 = vector.extract_strided_slice %0 {offsets = [0, 0, 0], sizes = [1, 1, 2304], strides = [1, 1, 1]} : vector<1x3x2304xf32> to vector<1x1x2304xf32>
    %10 = vector.broadcast %8 : vector<1x8x1xf32> to vector<1x8x2304xf32>
    %11 = vector.broadcast %9 : vector<1x1x2304xf32> to vector<1x8x2304xf32>
    %12 = arith.mulf %10, %11 : vector<1x8x2304xf32>
    %13 = arith.addf %5, %12 : vector<1x8x2304xf32>
    %14 = vector.extract_strided_slice %1 {offsets = [0, 1], sizes = [8, 1], strides = [1, 1]} : vector<8x3xf32> to vector<8x1xf32>
    %15 = vector.shape_cast %14 : vector<8x1xf32> to vector<8xf32>
    %16 = vector.shape_cast %15 : vector<8xf32> to vector<1x8x1xf32>
    %17 = vector.extract_strided_slice %0 {offsets = [0, 1, 0], sizes = [1, 1, 2304], strides = [1, 1, 1]} : vector<1x3x2304xf32> to vector<1x1x2304xf32>
    %18 = vector.broadcast %16 : vector<1x8x1xf32> to vector<1x8x2304xf32>
    %19 = vector.broadcast %17 : vector<1x1x2304xf32> to vector<1x8x2304xf32>
    %20 = arith.mulf %18, %19 : vector<1x8x2304xf32>
    %21 = arith.addf %13, %20 : vector<1x8x2304xf32>
    %22 = vector.extract_strided_slice %1 {offsets = [0, 2], sizes = [8, 1], strides = [1, 1]} : vector<8x3xf32> to vector<8x1xf32>
    %23 = vector.shape_cast %22 : vector<8x1xf32> to vector<8xf32>
    %24 = vector.shape_cast %23 : vector<8xf32> to vector<1x8x1xf32>
    %25 = vector.extract_strided_slice %0 {offsets = [0, 2, 0], sizes = [1, 1, 2304], strides = [1, 1, 1]} : vector<1x3x2304xf32> to vector<1x1x2304xf32>
    %26 = vector.broadcast %24 : vector<1x8x1xf32> to vector<1x8x2304xf32>
    %27 = vector.broadcast %25 : vector<1x1x2304xf32> to vector<1x8x2304xf32>
    %28 = arith.mulf %26, %27 : vector<1x8x2304xf32>
    %29 = arith.addf %21, %28 : vector<1x8x2304xf32>
    %c0_6 = arith.constant 0 : index
    %c0_7 = arith.constant 0 : index
    %c0_8 = arith.constant 0 : index
    %30 = vector.load %arg5[%c0_6, %c0_7, %c0_8] : memref<1x8x2304xf32, #tpu.memory_space<vmem>>, vector<1x8x2304xf32>
    tpu.vector_store %arg5[%c0_6, %c0_7, %c0_8], %29 {strides = array<i32>} : memref<1x8x2304xf32, #tpu.memory_space<vmem>>, vector<1x8x2304xf32>,
    return
  }
  func.func @transform_0(%arg0: i32, %arg1: i32) -> (i32, i32, i32) {
    %c0_i32 = arith.constant 0 : i32
    %c0_i32_0 = arith.constant 0 : i32
    return %arg0, %c0_i32, %arg1 : i32, i32, i32
  }
  func.func @transform_1(%arg0: i32, %arg1: i32) -> (i32, i32) {
    %c0_i32 = arith.constant 0 : i32
    %c0_i32_0 = arith.constant 0 : i32
    %c0_i32_1 = arith.constant 0 : i32
    return %c0_i32, %c0_i32_0 : i32, i32
  }
  func.func @transform_2(%arg0: i32, %arg1: i32) -> (i32, i32) {
    %c0_i32 = arith.constant 0 : i32
    %c0_i32_0 = arith.constant 0 : i32
    %c0_i32_1 = arith.constant 0 : i32
    return %c0_i32, %c0_i32_0 : i32, i32
  }
  func.func @transform_3(%arg0: i32, %arg1: i32) -> (i32, i32, i32) {
    %c0_i32 = arith.constant 0 : i32
    %c0_i32_0 = arith.constant 0 : i32
    return %arg0, %c0_i32, %arg1 : i32, i32, i32
  }
}

</mosaic_0001>

<llo_original>
// kernel: tpu_custom_call.1
$region0: #{tpu_custom_call.1}
  #allocation0 [shape = 'u32[]', space=smem, size = 0x4, offset = 0x4, fixed_abs, tag = 'smem constant byte address 0x4 - core index']
  #allocation1 [shape = 'u32[144,128]{1,0:T(1,128)}', space=vmem, size = 0x12000, scoped, tag = 'internal scratch']
  %s0 = inlined_call_operand.vmem [shape: f32[1,3,4356], index: 0, kind: input, shape index: {}]
  %s1 = inlined_call_operand.vmem [shape: f32[8,3], index: 1, kind: input, shape index: {}]
  %s2 = inlined_call_operand.vmem [shape: f32[8,1], index: 2, kind: input, shape index: {}]
  %s3 = inlined_call_operand.hbm [shape: f32[1,8,4356], index: 3, kind: output, shape index: {}]
  %s4 = sld [smem:[#allocation0]]
  $region45: #{tpu_custom_call.1} parent=0
    _
  %s6 = ssub.s32 1, %s4
  %s7 = scalar_select 0, %s6, %s4
  $region1: #{tpu_custom_call.1} parent=0
    #allocation2 [shape = 'u8[147456]{0}', space=vmem, size = 0x24000, scoped, tag = 'output window, operand 0']
    #allocation3 [shape = 's32[2]{0}', space=sflag, size = 0x8, scoped, tag = 'scoped memory for tpu_custom_call.1']
    %8 = vsyncpa [#allocation3], 0
    %s9 = scalar_lea.sflag [#allocation3], 1
    %10 = vsyncpa %s9, 0
    loop: start=0, step=1, limit=4
    $region2: #{tpu_custom_call.1} parent=1 // loop_pre_header
      _
    $region3: #{tpu_custom_call.1} parent=1 // loop_header
      %s12 = sphi 0, %s16
      %p13 = scmp.ge.s32.totalorder %s12, 4
      %s19 = sphi 0, %s31
      %s20 = sphi 0, %s27
      %s21 = sphi 0, %s19
      %s22 = sphi 0, %s20
      %s23 = sphi 0, %s21
      %s24 = sphi 0, %s22
      %s36 = sphi 0, %s38
      %s39 = sphi 0, %s36
      %s40 = sphi 0, %s39
      %s56 = sphi 0, %s40
      %s60 = sphi 0, %s60
      %s62 = sphi 0, %s60
      %s63 = sphi 0, %s62
      %s77 = sphi 0, %s63
      %s81 = sphi 0, %s81
      %s83 = sphi 0, %s81
      %s84 = sphi 0, %s83
      %s98 = sphi 0, %s84
      %s106 = sphi 0, %s108
      %s109 = sphi 0, %s106
      %s110 = sphi 0, %s109
      %s126 = sphi 0, %s110
    $region4: #{tpu_custom_call.1} parent=1 // loop_header_branch
      %15 = sbr.rel (%p13) target = $region8
    $region5: #{tpu_custom_call.1} parent=1 // loop_body
      %s17 = ssub.s32 %s12, 1
      %s18 = ssub.s32 %s12, 2
      %s25 = sadd.s32 1, %s20
      %p26 = scmp.ge.s32.totalorder %s25, 2
      %s27 = scalar_select %p26, 0, %s25
      %s28 = sadd.s32 1, %s19
      %s29 = scalar_select %p26, %s28, %s19
      %p30 = scmp.ge.s32.totalorder %s29, 1
      %s31 = scalar_select %p30, 0, %s29
      %s32 = ssub.s32 %s19, %s31
      %s33 = ssub.s32 %s20, %s27
      %s34 = sor.u32 %s32, %s33
      %p35 = scmp.eq.s32.totalorder %s34, 0
      %s37 = sadd.s32 %s36, 1
      %s38 = scalar_select %p35, %s36, %s37
      %p41 = pneg %p35
      %p42 = scmp.eq.s32.totalorder %s12, 1
      %p43 = por %p41, %p42
      %p44 = scmp.ne.s32.totalorder %s36, %s39
      %p45 = scmp.eq.s32.totalorder %s12, 0
      %p46 = por %p44, %p45
      %p47 = scmp.ne.s32.totalorder %s36, %s39
      %p48 = scmp.eq.s32.totalorder %s17, 1
      %p49 = por %p47, %p48
      %p50 = scmp.ne.s32.totalorder %s39, %s40
      %p51 = scmp.eq.s32.totalorder %s17, 0
      %p52 = por %p50, %p51
      %p53 = scmp.ne.s32.totalorder %s39, %s40
      %p54 = scmp.eq.s32.totalorder %s18, 1
      %p55 = por %p53, %p54
      %p57 = scmp.ne.s32.totalorder %s40, %s56
      %p58 = scmp.eq.s32.totalorder %s18, 0
      %p59 = por %p57, %p58
      %s61 = sadd.s32 %s60, 1
      %p64 = scmp.eq.s32.totalorder %s12, 1
      %p65 = scmp.ne.s32.totalorder %s60, %s62
      %p66 = scmp.eq.s32.totalorder %s12, 0
      %p67 = por %p65, %p66
      %p68 = scmp.ne.s32.totalorder %s60, %s62
      %p69 = scmp.eq.s32.totalorder %s17, 1
      %p70 = por %p68, %p69
      %p71 = scmp.ne.s32.totalorder %s62, %s63
      %p72 = scmp.eq.s32.totalorder %s17, 0
      %p73 = por %p71, %p72
      %p74 = scmp.ne.s32.totalorder %s62, %s63
      %p75 = scmp.eq.s32.totalorder %s18, 1
      %p76 = por %p74, %p75
      %p78 = scmp.ne.s32.totalorder %s63, %s77
      %p79 = scmp.eq.s32.totalorder %s18, 0
      %p80 = por %p78, %p79
      %s82 = sadd.s32 %s81, 1
      %p85 = scmp.eq.s32.totalorder %s12, 1
      %p86 = scmp.ne.s32.totalorder %s81, %s83
      %p87 = scmp.eq.s32.totalorder %s12, 0
      %p88 = por %p86, %p87
      %p89 = scmp.ne.s32.totalorder %s81, %s83
      %p90 = scmp.eq.s32.totalorder %s17, 1
      %p91 = por %p89, %p90
      %p92 = scmp.ne.s32.totalorder %s83, %s84
      %p93 = scmp.eq.s32.totalorder %s17, 0
      %p94 = por %p92, %p93
      %p95 = scmp.ne.s32.totalorder %s83, %s84
      %p96 = scmp.eq.s32.totalorder %s18, 1
      %p97 = por %p95, %p96
      %p99 = scmp.ne.s32.totalorder %s84, %s98
      %p100 = scmp.eq.s32.totalorder %s18, 0
      %p101 = por %p99, %p100
      %s102 = ssub.s32 %s19, %s31
      %s103 = ssub.s32 %s20, %s27
      %s104 = sor.u32 %s102, %s103
      %p105 = scmp.eq.s32.totalorder %s104, 0
      %s107 = sadd.s32 %s106, 1
      %s108 = scalar_select %p105, %s106, %s107
      %p111 = pneg %p105
      %p112 = scmp.eq.s32.totalorder %s12, 1
      %p113 = por %p111, %p112
      %p114 = scmp.ne.s32.totalorder %s106, %s109
      %p115 = scmp.eq.s32.totalorder %s12, 0
      %p116 = por %p114, %p115
      %p117 = scmp.ne.s32.totalorder %s106, %s109
      %p118 = scmp.eq.s32.totalorder %s17, 1
      %p119 = por %p117, %p118
      %p120 = scmp.ne.s32.totalorder %s109, %s110
      %p121 = scmp.eq.s32.totalorder %s17, 0
      %p122 = por %p120, %p121
      %p123 = scmp.ne.s32.totalorder %s109, %s110
      %p124 = scmp.eq.s32.totalorder %s18, 1
      %p125 = por %p123, %p124
      %p127 = scmp.ne.s32.totalorder %s110, %s126
      %p128 = scmp.eq.s32.totalorder %s18, 0
      %p129 = por %p127, %p128
      %p130 = scmp.le.s32.totalorder 1, %s12
      %p131 = scmp.lt.s32.totalorder %s12, 3
      %p132 = pnand %p130, %p131
      %p133 = pneg %p132
      // Predicated region
      $region9: #{tpu_custom_call.1} parent=5 // pred_check
        _
      $region10: #{tpu_custom_call.1} parent=5 // pred_check_branch
        %135 = sbr.rel (%p132) target = $region12
      $region11: #{tpu_custom_call.1} parent=5 // pred_region
        %s136 = ssub.s32 %s12, 1
        // Predicated region
        $region13: #{tpu_custom_call.1} parent=11 // pred_check
          %p137 = pneg %p73
        $region14: #{tpu_custom_call.1} parent=11 // pred_check_branch
          %139 = sbr.rel (%p137) target = $region16
        $region15: #{tpu_custom_call.1} parent=11 // pred_region
          _
        $region16: #{tpu_custom_call.1} parent=11 // pred_fallthru
          _
        // Predicated region
        $region17: #{tpu_custom_call.1} parent=11 // pred_check
          %p140 = pneg %p94
        $region18: #{tpu_custom_call.1} parent=11 // pred_check_branch
          %142 = sbr.rel (%p140) target = $region20
        $region19: #{tpu_custom_call.1} parent=11 // pred_region
          _
        $region20: #{tpu_custom_call.1} parent=11 // pred_fallthru
          _
      $region12: #{tpu_custom_call.1} parent=5 // pred_fallthru
        _
      %p143 = scmp.lt.s32.totalorder %s12, 2
      // Predicated region
      $region21: #{tpu_custom_call.1} parent=5 // pred_check
        %p144 = pneg %p143
      $region22: #{tpu_custom_call.1} parent=5 // pred_check_branch
        %146 = sbr.rel (%p144) target = $region24
      $region23: #{tpu_custom_call.1} parent=5 // pred_region
        // Predicated region
        $region25: #{tpu_custom_call.1} parent=23 // pred_check
          %p147 = pneg %p46
        $region26: #{tpu_custom_call.1} parent=23 // pred_check_branch
          %149 = sbr.rel (%p147) target = $region28
        $region27: #{tpu_custom_call.1} parent=23 // pred_region
          %s150 = smul.u32 18, %s20
          %s151 = ssub.s32 35, %s150
          %p152 = scmp.lt.s32.totalorder %s151, 18
          %s153 = scalar_select %p152, %s151, 18
          %s154 = smul.u32 64, %s153
          %p155 = scmp.lt.s32.totalorder %s19, 0
          %s156 = scalar_select %p155, %s19, 0
          %p157 = scmp.lt.s32.totalorder %s150, 34
          %s158 = scalar_select %p157, %s150, 34
          %s159 = smul.addr %s156, 35
          %s160 = sadd.s32 %s158, %s159
          %s161 = smul.addr %s160, 4
          %s162 = scalar_lea.vmem %s0, %s161
          %s163 = smul.u32 18, %s20
          %s164 = ssub.s32 35, %s163
          %p165 = scmp.lt.s32.totalorder %s164, 18
          %s166 = scalar_select %p165, %s164, 18
          %s167 = smul.u32 64, %s166
        $region28: #{tpu_custom_call.1} parent=23 // pred_fallthru
          _
      $region24: #{tpu_custom_call.1} parent=5 // pred_fallthru
        _
      %p168 = scmp.le.s32.totalorder 1, %s12
      %p169 = scmp.lt.s32.totalorder %s12, 3
      %p170 = pnand %p168, %p169
      %p171 = pneg %p170
      // Predicated region
      $region29: #{tpu_custom_call.1} parent=5 // pred_check
        _
      $region30: #{tpu_custom_call.1} parent=5 // pred_check_branch
        %173 = sbr.rel (%p170) target = $region32
      $region31: #{tpu_custom_call.1} parent=5 // pred_region
        %s174 = ssub.s32 %s12, 1
        %s175 = smul.u32 18, %s22
        %s176 = ssub.s32 35, %s175
        %p177 = scmp.lt.s32.totalorder %s176, 18
        %s178 = scalar_select %p177, %s176, 18
        %s179 = smul.u32 64, %s178
        %p180 = scmp.lt.s32.totalorder %s21, 0
        %s181 = scalar_select %p180, %s21, 0
        %p182 = scmp.lt.s32.totalorder %s175, 34
        %s183 = scalar_select %p182, %s175, 34
        %s184 = smul.addr %s181, 35
        %s185 = sadd.s32 %s183, %s184
        %s186 = smul.addr %s185, 4
        %s187 = scalar_lea.vmem %s0, %s186
        %p188 = pneg %p52
        %p189 = pneg %p49
        %p190 = pneg %p73
        %p191 = pneg %p70
        %p192 = pneg %p94
        %p193 = pneg %p91
        %p194 = pneg %p122
        %p195 = pneg %p119
        %s196 = sand.u32 %s109, 1
        %s197 = scalar_lea.sflag [#allocation3], %s196
        %s198 = sand.u32 %s109, 1
        %s199 = smul.addr %s198, 144
        %s200 = scalar_lea.vmem [#allocation2], %s199
        %s201 = smul.u32 18, %s22
        %s202 = ssub.s32 35, %s201
        %p203 = scmp.lt.s32.totalorder %s202, 18
        %s204 = scalar_select %p203, %s202, 18
        %s205 = smul.u32 64, %s204
        %p206 = scmp.lt.s32.totalorder %s21, 0
        %s207 = scalar_select %p206, %s21, 0
        %p208 = scmp.lt.s32.totalorder %s201, 34
        %s209 = scalar_select %p208, %s201, 34
        %s210 = smul.addr %s207, 35
        %s211 = sadd.s32 %s209, %s210
        %s212 = smul.addr %s211, 4
        %s213 = scalar_lea.vmem %s0, %s212
        %s214 = smul.u32 18, %s22
        %s215 = ssub.s32 35, %s214
        %p216 = scmp.lt.s32.totalorder %s215, 18
        %s217 = scalar_select %p216, %s215, 18
        %s218 = smul.u32 64, %s217
        %s219 = smul.u32 18, %s22
        %s220 = ssub.s32 35, %s219
        %p221 = scmp.lt.s32.totalorder %s220, 18
        %s222 = scalar_select %p221, %s220, 18
        %s223 = smul.u32 128, %s222
        %v224 = vld [vmem:[%s213] sm:$0x77]
        %v225 = vld [vmem:[%s213 + $0x8] sm:$0x77]
        %v226 = vld [vmem:[%s213 + $0x10] sm:$0x77]
        %v227 = vld [vmem:[%s213 + $0x18] sm:$0x77]
        %v228 = vld [vmem:[%s213 + $0x20] sm:$0x77]
        %v229 = vld [vmem:[%s213 + $0x28] sm:$0x77]
        %v230 = vld [vmem:[%s213 + $0x30] sm:$0x77]
        %v231 = vld [vmem:[%s213 + $0x38] sm:$0x77]
        %v232 = vld [vmem:[%s213 + $0x40] sm:$0x77]
        %v233 = vld [vmem:[%s1] sm:$0xff]
        %v234 = vld [vmem:[%s2] sm:$0xff]
        %236 = vset.pattern.permute.xlu0 0
        %237 = vperm.xlu0 %236, %v234
        %v238 = vpop.permute.xlu0 %237
        %241 = vset.pattern.permute.xlu0 0
        %242 = vperm.xlu0 %241, %v233
        %v243 = vpop.permute.xlu0 %242
        %v254 = vlaneseq
        %v255 = vshrl.u32 %v254, 7
        %v256 = vsub.s32 0, %v255
        %v257 = vrot.slane %v224, %v256
        %v258 = vlaneseq
        %v259 = vshrl.u32 %v258, 7
        %v260 = vsub.s32 4, %v259
        %v261 = vrot.slane %v224, %v260
        %v262 = vlaneseq
        %v263 = vshrl.u32 %v262, 7
        %v264 = vsub.s32 0, %v263
        %v265 = vrot.slane %v225, %v264
        %v266 = vlaneseq
        %v267 = vshrl.u32 %v266, 7
        %v268 = vsub.s32 4, %v267
        %v269 = vrot.slane %v225, %v268
        %v270 = vlaneseq
        %v271 = vshrl.u32 %v270, 7
        %v272 = vsub.s32 0, %v271
        %v273 = vrot.slane %v226, %v272
        %v274 = vlaneseq
        %v275 = vshrl.u32 %v274, 7
        %v276 = vsub.s32 4, %v275
        %v277 = vrot.slane %v226, %v276
        %v278 = vlaneseq
        %v279 = vshrl.u32 %v278, 7
        %v280 = vsub.s32 0, %v279
        %v281 = vrot.slane %v227, %v280
        %v282 = vlaneseq
        %v283 = vshrl.u32 %v282, 7
        %v284 = vsub.s32 4, %v283
        %v285 = vrot.slane %v227, %v284
        %v286 = vlaneseq
        %v287 = vshrl.u32 %v286, 7
        %v288 = vsub.s32 0, %v287
        %v289 = vrot.slane %v228, %v288
        %v290 = vlaneseq
        %v291 = vshrl.u32 %v290, 7
        %v292 = vsub.s32 4, %v291
        %v293 = vrot.slane %v228, %v292
        %v294 = vlaneseq
        %v295 = vshrl.u32 %v294, 7
        %v296 = vsub.s32 0, %v295
        %v297 = vrot.slane %v229, %v296
        %v298 = vlaneseq
        %v299 = vshrl.u32 %v298, 7
        %v300 = vsub.s32 4, %v299
        %v301 = vrot.slane %v229, %v300
        %v302 = vlaneseq
        %v303 = vshrl.u32 %v302, 7
        %v304 = vsub.s32 0, %v303
        %v305 = vrot.slane %v230, %v304
        %v306 = vlaneseq
        %v307 = vshrl.u32 %v306, 7
        %v308 = vsub.s32 4, %v307
        %v309 = vrot.slane %v230, %v308
        %v310 = vlaneseq
        %v311 = vshrl.u32 %v310, 7
        %v312 = vsub.s32 0, %v311
        %v313 = vrot.slane %v231, %v312
        %v314 = vlaneseq
        %v315 = vshrl.u32 %v314, 7
        %v316 = vsub.s32 4, %v315
        %v317 = vrot.slane %v231, %v316
        %v318 = vlaneseq
        %v319 = vshrl.u32 %v318, 7
        %v320 = vsub.s32 0, %v319
        %v321 = vrot.slane %v232, %v320
        %v322 = vlaneseq
        %v323 = vshrl.u32 %v322, 7
        %v324 = vsub.s32 4, %v323
        %v325 = vrot.slane %v232, %v324
        %v344 = vlaneseq
        %v345 = vshrl.u32 %v344, 7
        %v346 = vsub.s32 0, %v345
        %v347 = vrot.slane %v257, %v346
        %v348 = vlaneseq
        %v349 = vshrl.u32 %v348, 7
        %v350 = vsub.s32 0, %v349
        %v351 = vrot.slane %v261, %v350
        %v352 = vlaneseq
        %v353 = vshrl.u32 %v352, 7
        %v354 = vsub.s32 0, %v353
        %v355 = vrot.slane %v265, %v354
        %v356 = vlaneseq
        %v357 = vshrl.u32 %v356, 7
        %v358 = vsub.s32 0, %v357
        %v359 = vrot.slane %v269, %v358
        %v360 = vlaneseq
        %v361 = vshrl.u32 %v360, 7
        %v362 = vsub.s32 0, %v361
        %v363 = vrot.slane %v273, %v362
        %v364 = vlaneseq
        %v365 = vshrl.u32 %v364, 7
        %v366 = vsub.s32 0, %v365
        %v367 = vrot.slane %v277, %v366
        %v368 = vlaneseq
        %v369 = vshrl.u32 %v368, 7
        %v370 = vsub.s32 0, %v369
        %v371 = vrot.slane %v281, %v370
        %v372 = vlaneseq
        %v373 = vshrl.u32 %v372, 7
        %v374 = vsub.s32 0, %v373
        %v375 = vrot.slane %v285, %v374
        %v376 = vlaneseq
        %v377 = vshrl.u32 %v376, 7
        %v378 = vsub.s32 0, %v377
        %v379 = vrot.slane %v289, %v378
        %v380 = vlaneseq
        %v381 = vshrl.u32 %v380, 7
        %v382 = vsub.s32 0, %v381
        %v383 = vrot.slane %v293, %v382
        %v384 = vlaneseq
        %v385 = vshrl.u32 %v384, 7
        %v386 = vsub.s32 0, %v385
        %v387 = vrot.slane %v297, %v386
        %v388 = vlaneseq
        %v389 = vshrl.u32 %v388, 7
        %v390 = vsub.s32 0, %v389
        %v391 = vrot.slane %v301, %v390
        %v392 = vlaneseq
        %v393 = vshrl.u32 %v392, 7
        %v394 = vsub.s32 0, %v393
        %v395 = vrot.slane %v305, %v394
        %v396 = vlaneseq
        %v397 = vshrl.u32 %v396, 7
        %v398 = vsub.s32 0, %v397
        %v399 = vrot.slane %v309, %v398
        %v400 = vlaneseq
        %v401 = vshrl.u32 %v400, 7
        %v402 = vsub.s32 0, %v401
        %v403 = vrot.slane %v313, %v402
        %v404 = vlaneseq
        %v405 = vshrl.u32 %v404, 7
        %v406 = vsub.s32 0, %v405
        %v407 = vrot.slane %v317, %v406
        %v408 = vlaneseq
        %v409 = vshrl.u32 %v408, 7
        %v410 = vsub.s32 0, %v409
        %v411 = vrot.slane %v321, %v410
        %v412 = vlaneseq
        %v413 = vshrl.u32 %v412, 7
        %v414 = vsub.s32 0, %v413
        %v415 = vrot.slane %v325, %v414
        %v416 = vmul.f32 %v243, %v347
        %v417 = vmul.f32 %v243, %v351
        %v418 = vmul.f32 %v243, %v355
        %v419 = vmul.f32 %v243, %v359
        %v420 = vmul.f32 %v243, %v363
        %v421 = vmul.f32 %v243, %v367
        %v422 = vmul.f32 %v243, %v371
        %v423 = vmul.f32 %v243, %v375
        %v424 = vmul.f32 %v243, %v379
        %v425 = vmul.f32 %v243, %v383
        %v426 = vmul.f32 %v243, %v387
        %v427 = vmul.f32 %v243, %v391
        %v428 = vmul.f32 %v243, %v395
        %v429 = vmul.f32 %v243, %v399
        %v430 = vmul.f32 %v243, %v403
        %v431 = vmul.f32 %v243, %v407
        %v432 = vmul.f32 %v243, %v411
        %v433 = vmul.f32 %v243, %v415
        %v434 = vadd.f32 %v238, %v416
        %v435 = vadd.f32 %v238, %v417
        %v436 = vadd.f32 %v238, %v418
        %v437 = vadd.f32 %v238, %v419
        %v438 = vadd.f32 %v238, %v420
        %v439 = vadd.f32 %v238, %v421
        %v440 = vadd.f32 %v238, %v422
        %v441 = vadd.f32 %v238, %v423
        %v442 = vadd.f32 %v238, %v424
        %v443 = vadd.f32 %v238, %v425
        %v444 = vadd.f32 %v238, %v426
        %v445 = vadd.f32 %v238, %v427
        %v446 = vadd.f32 %v238, %v428
        %v447 = vadd.f32 %v238, %v429
        %v448 = vadd.f32 %v238, %v430
        %v449 = vadd.f32 %v238, %v431
        %v450 = vadd.f32 %v238, %v432
        %v451 = vadd.f32 %v238, %v433
        %452 = vset.pattern.permute.xlu0 1
        %453 = vperm.xlu0 %452, %v233
        %v454 = vpop.permute.xlu0 %453
        %v456 = vlaneseq
        %v457 = vshrl.u32 %v456, 7
        %v458 = vsub.s32 1, %v457
        %v459 = vrot.slane %v224, %v458
        %v460 = vlaneseq
        %v461 = vshrl.u32 %v460, 7
        %v462 = vsub.s32 5, %v461
        %v463 = vrot.slane %v224, %v462
        %v464 = vlaneseq
        %v465 = vshrl.u32 %v464, 7
        %v466 = vsub.s32 1, %v465
        %v467 = vrot.slane %v225, %v466
        %v468 = vlaneseq
        %v469 = vshrl.u32 %v468, 7
        %v470 = vsub.s32 5, %v469
        %v471 = vrot.slane %v225, %v470
        %v472 = vlaneseq
        %v473 = vshrl.u32 %v472, 7
        %v474 = vsub.s32 1, %v473
        %v475 = vrot.slane %v226, %v474
        %v476 = vlaneseq
        %v477 = vshrl.u32 %v476, 7
        %v478 = vsub.s32 5, %v477
        %v479 = vrot.slane %v226, %v478
        %v480 = vlaneseq
        %v481 = vshrl.u32 %v480, 7
        %v482 = vsub.s32 1, %v481
        %v483 = vrot.slane %v227, %v482
        %v484 = vlaneseq
        %v485 = vshrl.u32 %v484, 7
        %v486 = vsub.s32 5, %v485
        %v487 = vrot.slane %v227, %v486
        %v488 = vlaneseq
        %v489 = vshrl.u32 %v488, 7
        %v490 = vsub.s32 1, %v489
        %v491 = vrot.slane %v228, %v490
        %v492 = vlaneseq
        %v493 = vshrl.u32 %v492, 7
        %v494 = vsub.s32 5, %v493
        %v495 = vrot.slane %v228, %v494
        %v496 = vlaneseq
        %v497 = vshrl.u32 %v496, 7
        %v498 = vsub.s32 1, %v497
        %v499 = vrot.slane %v229, %v498
        %v500 = vlaneseq
        %v501 = vshrl.u32 %v500, 7
        %v502 = vsub.s32 5, %v501
        %v503 = vrot.slane %v229, %v502
        %v504 = vlaneseq
        %v505 = vshrl.u32 %v504, 7
        %v506 = vsub.s32 1, %v505
        %v507 = vrot.slane %v230, %v506
        %v508 = vlaneseq
        %v509 = vshrl.u32 %v508, 7
        %v510 = vsub.s32 5, %v509
        %v511 = vrot.slane %v230, %v510
        %v512 = vlaneseq
        %v513 = vshrl.u32 %v512, 7
        %v514 = vsub.s32 1, %v513
        %v515 = vrot.slane %v231, %v514
        %v516 = vlaneseq
        %v517 = vshrl.u32 %v516, 7
        %v518 = vsub.s32 5, %v517
        %v519 = vrot.slane %v231, %v518
        %v520 = vlaneseq
        %v521 = vshrl.u32 %v520, 7
        %v522 = vsub.s32 1, %v521
        %v523 = vrot.slane %v232, %v522
        %v524 = vlaneseq
        %v525 = vshrl.u32 %v524, 7
        %v526 = vsub.s32 5, %v525
        %v527 = vrot.slane %v232, %v526
        %v546 = vlaneseq
        %v547 = vshrl.u32 %v546, 7
        %v548 = vsub.s32 1, %v547
        %v549 = vrot.slane %v459, %v548
        %v550 = vlaneseq
        %v551 = vshrl.u32 %v550, 7
        %v552 = vsub.s32 1, %v551
        %v553 = vrot.slane %v463, %v552
        %v554 = vlaneseq
        %v555 = vshrl.u32 %v554, 7
        %v556 = vsub.s32 1, %v555
        %v557 = vrot.slane %v467, %v556
        %v558 = vlaneseq
        %v559 = vshrl.u32 %v558, 7
        %v560 = vsub.s32 1, %v559
        %v561 = vrot.slane %v471, %v560
        %v562 = vlaneseq
        %v563 = vshrl.u32 %v562, 7
        %v564 = vsub.s32 1, %v563
        %v565 = vrot.slane %v475, %v564
        %v566 = vlaneseq
        %v567 = vshrl.u32 %v566, 7
        %v568 = vsub.s32 1, %v567
        %v569 = vrot.slane %v479, %v568
        %v570 = vlaneseq
        %v571 = vshrl.u32 %v570, 7
        %v572 = vsub.s32 1, %v571
        %v573 = vrot.slane %v483, %v572
        %v574 = vlaneseq
        %v575 = vshrl.u32 %v574, 7
        %v576 = vsub.s32 1, %v575
        %v577 = vrot.slane %v487, %v576
        %v578 = vlaneseq
        %v579 = vshrl.u32 %v578, 7
        %v580 = vsub.s32 1, %v579
        %v581 = vrot.slane %v491, %v580
        %v582 = vlaneseq
        %v583 = vshrl.u32 %v582, 7
        %v584 = vsub.s32 1, %v583
        %v585 = vrot.slane %v495, %v584
        %v586 = vlaneseq
        %v587 = vshrl.u32 %v586, 7
        %v588 = vsub.s32 1, %v587
        %v589 = vrot.slane %v499, %v588
        %v590 = vlaneseq
        %v591 = vshrl.u32 %v590, 7
        %v592 = vsub.s32 1, %v591
        %v593 = vrot.slane %v503, %v592
        %v594 = vlaneseq
        %v595 = vshrl.u32 %v594, 7
        %v596 = vsub.s32 1, %v595
        %v597 = vrot.slane %v507, %v596
        %v598 = vlaneseq
        %v599 = vshrl.u32 %v598, 7
        %v600 = vsub.s32 1, %v599
        %v601 = vrot.slane %v511, %v600
        %v602 = vlaneseq
        %v603 = vshrl.u32 %v602, 7
        %v604 = vsub.s32 1, %v603
        %v605 = vrot.slane %v515, %v604
        %v606 = vlaneseq
        %v607 = vshrl.u32 %v606, 7
        %v608 = vsub.s32 1, %v607
        %v609 = vrot.slane %v519, %v608
        %v610 = vlaneseq
        %v611 = vshrl.u32 %v610, 7
        %v612 = vsub.s32 1, %v611
        %v613 = vrot.slane %v523, %v612
        %v614 = vlaneseq
        %v615 = vshrl.u32 %v614, 7
        %v616 = vsub.s32 1, %v615
        %v617 = vrot.slane %v527, %v616
        %v618 = vmul.f32 %v454, %v549
        %v619 = vmul.f32 %v454, %v553
        %v620 = vmul.f32 %v454, %v557
        %v621 = vmul.f32 %v454, %v561
        %v622 = vmul.f32 %v454, %v565
        %v623 = vmul.f32 %v454, %v569
        %v624 = vmul.f32 %v454, %v573
        %v625 = vmul.f32 %v454, %v577
        %v626 = vmul.f32 %v454, %v581
        %v627 = vmul.f32 %v454, %v585
        %v628 = vmul.f32 %v454, %v589
        %v629 = vmul.f32 %v454, %v593
        %v630 = vmul.f32 %v454, %v597
        %v631 = vmul.f32 %v454, %v601
        %v632 = vmul.f32 %v454, %v605
        %v633 = vmul.f32 %v454, %v609
        %v634 = vmul.f32 %v454, %v613
        %v635 = vmul.f32 %v454, %v617
        %v636 = vadd.f32 %v434, %v618
        %v637 = vadd.f32 %v435, %v619
        %v638 = vadd.f32 %v436, %v620
        %v639 = vadd.f32 %v437, %v621
        %v640 = vadd.f32 %v438, %v622
        %v641 = vadd.f32 %v439, %v623
        %v642 = vadd.f32 %v440, %v624
        %v643 = vadd.f32 %v441, %v625
        %v644 = vadd.f32 %v442, %v626
        %v645 = vadd.f32 %v443, %v627
        %v646 = vadd.f32 %v444, %v628
        %v647 = vadd.f32 %v445, %v629
        %v648 = vadd.f32 %v446, %v630
        %v649 = vadd.f32 %v447, %v631
        %v650 = vadd.f32 %v448, %v632
        %v651 = vadd.f32 %v449, %v633
        %v652 = vadd.f32 %v450, %v634
        %v653 = vadd.f32 %v451, %v635
        %654 = vset.pattern.permute.xlu0 2
        %655 = vperm.xlu0 %654, %v233
        %v656 = vpop.permute.xlu0 %655
        %v658 = vlaneseq
        %v659 = vshrl.u32 %v658, 7
        %v660 = vsub.s32 2, %v659
        %v661 = vrot.slane %v224, %v660
        %v662 = vlaneseq
        %v663 = vshrl.u32 %v662, 7
        %v664 = vsub.s32 6, %v663
        %v665 = vrot.slane %v224, %v664
        %v666 = vlaneseq
        %v667 = vshrl.u32 %v666, 7
        %v668 = vsub.s32 2, %v667
        %v669 = vrot.slane %v225, %v668
        %v670 = vlaneseq
        %v671 = vshrl.u32 %v670, 7
        %v672 = vsub.s32 6, %v671
        %v673 = vrot.slane %v225, %v672
        %v674 = vlaneseq
        %v675 = vshrl.u32 %v674, 7
        %v676 = vsub.s32 2, %v675
        %v677 = vrot.slane %v226, %v676
        %v678 = vlaneseq
        %v679 = vshrl.u32 %v678, 7
        %v680 = vsub.s32 6, %v679
        %v681 = vrot.slane %v226, %v680
        %v682 = vlaneseq
        %v683 = vshrl.u32 %v682, 7
        %v684 = vsub.s32 2, %v683
        %v685 = vrot.slane %v227, %v684
        %v686 = vlaneseq
        %v687 = vshrl.u32 %v686, 7
        %v688 = vsub.s32 6, %v687
        %v689 = vrot.slane %v227, %v688
        %v690 = vlaneseq
        %v691 = vshrl.u32 %v690, 7
        %v692 = vsub.s32 2, %v691
        %v693 = vrot.slane %v228, %v692
        %v694 = vlaneseq
        %v695 = vshrl.u32 %v694, 7
        %v696 = vsub.s32 6, %v695
        %v697 = vrot.slane %v228, %v696
        %v698 = vlaneseq
        %v699 = vshrl.u32 %v698, 7
        %v700 = vsub.s32 2, %v699
        %v701 = vrot.slane %v229, %v700
        %v702 = vlaneseq
        %v703 = vshrl.u32 %v702, 7
        %v704 = vsub.s32 6, %v703
        %v705 = vrot.slane %v229, %v704
        %v706 = vlaneseq
        %v707 = vshrl.u32 %v706, 7
        %v708 = vsub.s32 2, %v707
        %v709 = vrot.slane %v230, %v708
        %v710 = vlaneseq
        %v711 = vshrl.u32 %v710, 7
        %v712 = vsub.s32 6, %v711
        %v713 = vrot.slane %v230, %v712
        %v714 = vlaneseq
        %v715 = vshrl.u32 %v714, 7
        %v716 = vsub.s32 2, %v715
        %v717 = vrot.slane %v231, %v716
        %v718 = vlaneseq
        %v719 = vshrl.u32 %v718, 7
        %v720 = vsub.s32 6, %v719
        %v721 = vrot.slane %v231, %v720
        %v722 = vlaneseq
        %v723 = vshrl.u32 %v722, 7
        %v724 = vsub.s32 2, %v723
        %v725 = vrot.slane %v232, %v724
        %v726 = vlaneseq
        %v727 = vshrl.u32 %v726, 7
        %v728 = vsub.s32 6, %v727
        %v729 = vrot.slane %v232, %v728
        %v748 = vlaneseq
        %v749 = vshrl.u32 %v748, 7
        %v750 = vsub.s32 2, %v749
        %v751 = vrot.slane %v661, %v750
        %v752 = vlaneseq
        %v753 = vshrl.u32 %v752, 7
        %v754 = vsub.s32 2, %v753
        %v755 = vrot.slane %v665, %v754
        %v756 = vlaneseq
        %v757 = vshrl.u32 %v756, 7
        %v758 = vsub.s32 2, %v757
        %v759 = vrot.slane %v669, %v758
        %v760 = vlaneseq
        %v761 = vshrl.u32 %v760, 7
        %v762 = vsub.s32 2, %v761
        %v763 = vrot.slane %v673, %v762
        %v764 = vlaneseq
        %v765 = vshrl.u32 %v764, 7
        %v766 = vsub.s32 2, %v765
        %v767 = vrot.slane %v677, %v766
        %v768 = vlaneseq
        %v769 = vshrl.u32 %v768, 7
        %v770 = vsub.s32 2, %v769
        %v771 = vrot.slane %v681, %v770
        %v772 = vlaneseq
        %v773 = vshrl.u32 %v772, 7
        %v774 = vsub.s32 2, %v773
        %v775 = vrot.slane %v685, %v774
        %v776 = vlaneseq
        %v777 = vshrl.u32 %v776, 7
        %v778 = vsub.s32 2, %v777
        %v779 = vrot.slane %v689, %v778
        %v780 = vlaneseq
        %v781 = vshrl.u32 %v780, 7
        %v782 = vsub.s32 2, %v781
        %v783 = vrot.slane %v693, %v782
        %v784 = vlaneseq
        %v785 = vshrl.u32 %v784, 7
        %v786 = vsub.s32 2, %v785
        %v787 = vrot.slane %v697, %v786
        %v788 = vlaneseq
        %v789 = vshrl.u32 %v788, 7
        %v790 = vsub.s32 2, %v789
        %v791 = vrot.slane %v701, %v790
        %v792 = vlaneseq
        %v793 = vshrl.u32 %v792, 7
        %v794 = vsub.s32 2, %v793
        %v795 = vrot.slane %v705, %v794
        %v796 = vlaneseq
        %v797 = vshrl.u32 %v796, 7
        %v798 = vsub.s32 2, %v797
        %v799 = vrot.slane %v709, %v798
        %v800 = vlaneseq
        %v801 = vshrl.u32 %v800, 7
        %v802 = vsub.s32 2, %v801
        %v803 = vrot.slane %v713, %v802
        %v804 = vlaneseq
        %v805 = vshrl.u32 %v804, 7
        %v806 = vsub.s32 2, %v805
        %v807 = vrot.slane %v717, %v806
        %v808 = vlaneseq
        %v809 = vshrl.u32 %v808, 7
        %v810 = vsub.s32 2, %v809
        %v811 = vrot.slane %v721, %v810
        %v812 = vlaneseq
        %v813 = vshrl.u32 %v812, 7
        %v814 = vsub.s32 2, %v813
        %v815 = vrot.slane %v725, %v814
        %v816 = vlaneseq
        %v817 = vshrl.u32 %v816, 7
        %v818 = vsub.s32 2, %v817
        %v819 = vrot.slane %v729, %v818
        %v820 = vmul.f32 %v656, %v751
        %v821 = vmul.f32 %v656, %v755
        %v822 = vmul.f32 %v656, %v759
        %v823 = vmul.f32 %v656, %v763
        %v824 = vmul.f32 %v656, %v767
        %v825 = vmul.f32 %v656, %v771
        %v826 = vmul.f32 %v656, %v775
        %v827 = vmul.f32 %v656, %v779
        %v828 = vmul.f32 %v656, %v783
        %v829 = vmul.f32 %v656, %v787
        %v830 = vmul.f32 %v656, %v791
        %v831 = vmul.f32 %v656, %v795
        %v832 = vmul.f32 %v656, %v799
        %v833 = vmul.f32 %v656, %v803
        %v834 = vmul.f32 %v656, %v807
        %v835 = vmul.f32 %v656, %v811
        %v836 = vmul.f32 %v656, %v815
        %v837 = vmul.f32 %v656, %v819
        %v838 = vadd.f32 %v636, %v820
        %v839 = vadd.f32 %v637, %v821
        %v840 = vadd.f32 %v638, %v822
        %v841 = vadd.f32 %v639, %v823
        %v842 = vadd.f32 %v640, %v824
        %v843 = vadd.f32 %v641, %v825
        %v844 = vadd.f32 %v642, %v826
        %v845 = vadd.f32 %v643, %v827
        %v846 = vadd.f32 %v644, %v828
        %v847 = vadd.f32 %v645, %v829
        %v848 = vadd.f32 %v646, %v830
        %v849 = vadd.f32 %v647, %v831
        %v850 = vadd.f32 %v648, %v832
        %v851 = vadd.f32 %v649, %v833
        %v852 = vadd.f32 %v650, %v834
        %v853 = vadd.f32 %v651, %v835
        %v854 = vadd.f32 %v652, %v836
        %v855 = vadd.f32 %v653, %v837
        %856 = vst [vmem:[%s200] sm:$0xff] %v838
        %857 = vst [vmem:[%s200 + $0x8] sm:$0xff] %v839
        %858 = vst [vmem:[%s200 + $0x10] sm:$0xff] %v840
        %859 = vst [vmem:[%s200 + $0x18] sm:$0xff] %v841
        %860 = vst [vmem:[%s200 + $0x20] sm:$0xff] %v842
        %861 = vst [vmem:[%s200 + $0x28] sm:$0xff] %v843
        %862 = vst [vmem:[%s200 + $0x30] sm:$0xff] %v844
        %863 = vst [vmem:[%s200 + $0x38] sm:$0xff] %v845
        %864 = vst [vmem:[%s200 + $0x40] sm:$0xff] %v846
        %865 = vst [vmem:[%s200 + $0x48] sm:$0xff] %v847
        %866 = vst [vmem:[%s200 + $0x50] sm:$0xff] %v848
        %867 = vst [vmem:[%s200 + $0x58] sm:$0xff] %v849
        %868 = vst [vmem:[%s200 + $0x60] sm:$0xff] %v850
        %869 = vst [vmem:[%s200 + $0x68] sm:$0xff] %v851
        %870 = vst [vmem:[%s200 + $0x70] sm:$0xff] %v852
        %871 = vst [vmem:[%s200 + $0x78] sm:$0xff] %v853
        %872 = vst [vmem:[%s200 + $0x80] sm:$0xff] %v854
        %873 = vst [vmem:[%s200 + $0x88] sm:$0xff] %v855
        %s874 = sand.u32 %s109, 1
        %s875 = scalar_lea.sflag [#allocation3], %s874
        %s876 = sand.u32 %s109, 1
        %s877 = smul.addr %s876, 144
        %s878 = scalar_lea.vmem [#allocation2], %s877
        // Predicated region
        $region33: #{tpu_custom_call.1} parent=31 // pred_check
          %p879 = pneg %p119
        $region34: #{tpu_custom_call.1} parent=31 // pred_check_branch
          %881 = sbr.rel (%p879) target = $region36
        $region35: #{tpu_custom_call.1} parent=31 // pred_region
          %s882 = smul.u32 18, %s22
          %s883 = ssub.s32 35, %s882
          %p884 = scmp.lt.s32.totalorder %s883, 18
          %s885 = scalar_select %p884, %s883, 18
          %s886 = smul.u32 128, %s885
          %s888 = ssub.s32 2304, %s886
          %889 = vsyncadd %s875, %s888
          %p890 = scmp.ne.s32.totalorder 0, %s886
          %s891 = smul.addr %s21, 35
          %s892 = sadd.s32 %s882, %s891
          %s893 = smul.addr %s892, 128
          %s894 = scalar_lea.hbm %s3, %s893
          %s895 = smul.u32 %s885, 8
          %s896 = sshll.u32 %s895, 4
          %s897 = sshll.u32 %s878, 4
          %s898 = int_to_ptr.vmem [resolvable:$true] %s897
          %900 = dma.vmem_to_hbm [thread:$0]  (%p890), %s898, %s896, %s894, %s875
        $region36: #{tpu_custom_call.1} parent=31 // pred_fallthru
          _
      $region32: #{tpu_custom_call.1} parent=5 // pred_fallthru
        _
      %p901 = scmp.le.s32.totalorder 2, %s12
      // Predicated region
      $region37: #{tpu_custom_call.1} parent=5 // pred_check
        %p902 = pneg %p901
      $region38: #{tpu_custom_call.1} parent=5 // pred_check_branch
        %904 = sbr.rel (%p902) target = $region40
      $region39: #{tpu_custom_call.1} parent=5 // pred_region
        %s905 = ssub.s32 %s12, 2
        // Predicated region
        $region41: #{tpu_custom_call.1} parent=39 // pred_check
          %p906 = pneg %p125
        $region42: #{tpu_custom_call.1} parent=39 // pred_check_branch
          %908 = sbr.rel (%p906) target = $region44
        $region43: #{tpu_custom_call.1} parent=39 // pred_region
          %s909 = sand.u32 %s110, 1
          %s910 = scalar_lea.sflag [#allocation3], %s909
          %s911 = sand.u32 %s110, 1
          %s912 = smul.addr %s911, 144
          %s913 = scalar_lea.vmem [#allocation2], %s912
          %914 = dma.done %s910, 2304
        $region44: #{tpu_custom_call.1} parent=39 // pred_fallthru
          _
      $region40: #{tpu_custom_call.1} parent=5 // pred_fallthru
        _
    $region6: #{tpu_custom_call.1} parent=1 // loop_footer
      %s16 = sadd.s32 1, %s12
    $region7: #{tpu_custom_call.1} parent=1 // loop_footer_branch
      %11 = sbr.rel target = $region3
    $region8: #{tpu_custom_call.1} parent=1 // loop_exit
      _
    %915 = vsyncpa [#allocation3], 1
    %s916 = scalar_lea.sflag [#allocation3], 1
    %917 = vsyncpa %s916, 1

</llo_original>
